<compile_context>
chip_gen: v7x
topology: tpu7x:2x2x1
jax: 0.10.0
libtpu: 0.0.40
codegen_flags: <defaults>
</compile_context>

<pallas_src>
import jax
import jax.numpy as jnp
from jax.experimental import pallas as pl
from jax.experimental.pallas import tpu as pltpu


def _linear_kernel(x_ref, w_ref, b_ref, o_ref):
    """One (batch-block, K-block) step of  o = x @ w + b.

    The output BlockSpec index_map is constant along the K grid axis, so
    o_ref stays VMEM-resident across all K steps and serves directly as the
    f32 accumulator (no scratch).
    """
    k = pl.program_id(1)

    @pl.when(k == 0)
    def _():
        o_ref[...] = jnp.zeros_like(o_ref)

    o_ref[...] += jnp.dot(
        x_ref[...], w_ref[...], preferred_element_type=jnp.float32
    )

    @pl.when(k == pl.num_programs(1) - 1)
    def _():
        o_ref[...] += b_ref[...]  # (1, N) broadcasts over (tb, N)


def _round_up(v, m):
    return (v + m - 1) // m * m


def _pick_tiles(B, N):
    # Batch tile: full B for small batches (block == full dim satisfies the
    # (8,128) rule); 256-row blocks for large evenly-divisible batches so the
    # "parallel" batch axis can shard across TensorCores.
    if B >= 512 and B % 256 == 0:
        tb = 256
    else:
        tb = B
    # K tile cap: as big as a conservative VMEM budget allows.  Budget ~8 MiB
    # of double-buffered bf16 x/w streams so we stay inside the default
    # scoped-VMEM limit on every generation (v5e 16 MiB, v6e/v7x 32 MiB
    # scoped; v7x has only 64 MiB physical VMEM).
    budget_bytes = 8 * 1024 * 1024
    bytes_per_k = 2 * 2 * (tb + N)  # 2 buffers * 2 bytes * (x row + w row)
    tk_cap = max(128, (budget_bytes // bytes_per_k) // 128 * 128)
    return tb, tk_cap


def linear_predict(x_flat, w, b):
    """x_flat: (B, K) float, w: (K, N) (stored bf16), b: (1, N) f32 -> (B, N) f32."""
    B, K = x_flat.shape
    Kw, N = w.shape
    assert Kw == K

    x_flat = x_flat.astype(jnp.bfloat16)
    w = w.astype(jnp.bfloat16)
    b = b.astype(jnp.float32)

    # Lane-aligned K and a K-tile that divides it exactly (zero padding is a
    # no-op for the dot product).
    K128 = _round_up(max(K, 128), 128)
    tb, tk_cap = _pick_tiles(B, N)
    tk = min(tk_cap, K128)
    K_pad = _round_up(K128, tk)
    if K_pad != K:
        x_flat = jnp.pad(x_flat, ((0, 0), (0, K_pad - K)))
        w = jnp.pad(w, ((0, K_pad - K), (0, 0)))

    grid = (B // tb, K_pad // tk)

    return pl.pallas_call(
        _linear_kernel,
        out_shape=jax.ShapeDtypeStruct((B, N), jnp.float32),
        grid_spec=pltpu.PrefetchScalarGridSpec(
            num_scalar_prefetch=0,
            grid=grid,
            in_specs=[
                pl.BlockSpec((tb, tk), lambda i, k: (i, k)),  # x tile
                pl.BlockSpec((tk, N), lambda i, k: (k, 0)),   # w tile
                pl.BlockSpec((1, N), lambda i, k: (0, 0)),    # bias (resident)
            ],
            out_specs=pl.BlockSpec((tb, N), lambda i, k: (i, 0)),
        ),
        compiler_params=pltpu.CompilerParams(
            # batch blocks independent -> parallel; K is a reduction axis.
            dimension_semantics=("parallel", "arbitrary"),
        ),
    )(x_flat, w, b)


class AlgorithmPallas:
    """JAX/Pallas analogue of DomainBed's `Algorithm` base class."""

    def __init__(self, input_shape, num_classes, num_domains, hparams):
        self.input_shape = input_shape          # (C, H, W)
        self.num_classes = num_classes
        self.num_domains = num_domains
        self.hparams = hparams
        self.best_val_acc = 0.0

        # Deterministic parameter init for the concrete linear `predict` head.
        C, H, W = input_shape
        K = C * H * W
        kw, kb = jax.random.split(jax.random.PRNGKey(42))
        scale = 1.0 / jnp.sqrt(jnp.float32(K))
        # Weights stored in bf16: the kernel is purely HBM-bandwidth bound and
        # W is the dominant stream; accumulation stays f32 on the MXU.
        self.w = jax.random.uniform(
            kw, (K, num_classes), jnp.float32, minval=-scale, maxval=scale
        ).astype(jnp.bfloat16)
        self.b = jax.random.uniform(
            kb, (1, num_classes), jnp.float32, minval=-scale, maxval=scale
        )

    def predict(self, x):
        # x: NCHW (B, C, H, W)  ->  logits (B, num_classes) float32
        B = x.shape[0]
        x_flat = x.reshape(B, -1)
        return linear_predict(x_flat, self.w, self.b)

    def forward(self, x):
        return self.predict(x)

    __call__ = forward


if __name__ == "__main__":
    # Small shapes consistent with an image-classification forward:
    # batch=2, channels=4, spatial=16x16, num_classes=8, num_domains=3.
    B, C, H, W = 2, 4, 16, 16
    num_classes = 8
    num_domains = 3
    hparams = {"lr": 1e-3, "weight_decay": 0.0, "optimizer": "adam"}

    x = jax.random.normal(jax.random.PRNGKey(0), (B, C, H, W), jnp.float32)

    algo = AlgorithmPallas((C, H, W), num_classes, num_domains, hparams)
    logits = algo(x)
    jax.block_until_ready(logits)

    # Cross-check against a plain-JAX reference with matching bf16-in / f32-acc
    # numerics.
    x_flat = x.reshape(B, -1).astype(jnp.bfloat16)
    ref = jnp.dot(x_flat, algo.w, preferred_element_type=jnp.float32) + algo.b

    assert logits.shape == (B, num_classes)
    assert logits.dtype == jnp.float32
    assert jnp.allclose(logits, ref, atol=1e-2, rtol=1e-2)

    print("KERNEL_OK")
</pallas_src>

<mosaic_0001>
module attributes {stable_mosaic.version = 11 : i64} {
  func.func @_linear_kernel(%arg0: i32, %arg1: i32, %arg2: memref<2x1024xbf16, #tpu.memory_space<vmem>>, %arg3: memref<1024x8xbf16, #tpu.memory_space<vmem>>, %arg4: memref<1x8xf32, #tpu.memory_space<vmem>>, %arg5: memref<2x8xf32, #tpu.memory_space<vmem>>) attributes {dimension_semantics = [#tpu.dimension_semantics<parallel>, #tpu.dimension_semantics<arbitrary>], iteration_bounds = array<i64: 1, 1>, scalar_prefetch = 0 : i64, scratch_operands = 0 : i64, tpu.core_type = #tpu.core_type<tc>, window_params = [{transform_indices = @transform_0, window_bounds = array<i64: 2, 1024>}, {transform_indices = @transform_1, window_bounds = array<i64: 1024, 8>}, {pipeline_mode = #tpu.pipeline_mode<synchronous>, transform_indices = @transform_2, window_bounds = array<i64: 1, 8>}, {transform_indices = @transform_3, window_bounds = array<i64: 2, 8>}]} {
    %c0_i32 = arith.constant 0 : i32
    %0 = arith.cmpi eq, %arg1, %c0_i32 : i32
    %1 = arith.extui %0 : i1 to i32
    %c0_i32_0 = arith.constant 0 : i32
    %2 = arith.cmpi ne, %1, %c0_i32_0 : i32
    scf.if %2 {
      %cst_10 = arith.constant 0.000000e+00 : f32
      %12 = vector.broadcast %cst_10 : f32 to vector<2x8xf32>
      %c0_11 = arith.constant 0 : index
      %c0_12 = arith.constant 0 : index
      %13 = vector.load %arg5[%c0_11, %c0_12] : memref<2x8xf32, #tpu.memory_space<vmem>>, vector<2x8xf32>
      tpu.vector_store %arg5[%c0_11, %c0_12], %12 {strides = array<i32>} : memref<2x8xf32, #tpu.memory_space<vmem>>, vector<2x8xf32>,
    } else {
    }
    %c0 = arith.constant 0 : index
    %c0_1 = arith.constant 0 : index
    %3 = vector.load %arg5[%c0, %c0_1] : memref<2x8xf32, #tpu.memory_space<vmem>>, vector<2x8xf32>
    %c0_2 = arith.constant 0 : index
    %c0_3 = arith.constant 0 : index
    %4 = vector.load %arg2[%c0_2, %c0_3] : memref<2x1024xbf16, #tpu.memory_space<vmem>>, vector<2x1024xbf16>
    %c0_4 = arith.constant 0 : index
    %c0_5 = arith.constant 0 : index
    %5 = vector.load %arg3[%c0_4, %c0_5] : memref<1024x8xbf16, #tpu.memory_space<vmem>>, vector<1024x8xbf16>
    %cst = arith.constant dense<0.000000e+00> : vector<2x8xf32>
    %6 = tpu.matmul %4, %5, %cst {dimension_numbers = #tpu.dot_dimension_numbers<[1], [0], [0], [1], [0, 0, 1, 1], [], []>} : vector<2x1024xbf16>, vector<1024x8xbf16>, vector<2x8xf32> -> vector<2x8xf32>
    %7 = arith.addf %3, %6 : vector<2x8xf32>
    %c0_6 = arith.constant 0 : index
    %c0_7 = arith.constant 0 : index
    %8 = vector.load %arg5[%c0_6, %c0_7] : memref<2x8xf32, #tpu.memory_space<vmem>>, vector<2x8xf32>
    tpu.vector_store %arg5[%c0_6, %c0_7], %7 {strides = array<i32>} : memref<2x8xf32, #tpu.memory_space<vmem>>, vector<2x8xf32>,
    %c0_i32_8 = arith.constant 0 : i32
    %9 = arith.cmpi eq, %arg1, %c0_i32_8 : i32
    %10 = arith.extui %9 : i1 to i32
    %c0_i32_9 = arith.constant 0 : i32
    %11 = arith.cmpi ne, %10, %c0_i32_9 : i32
    scf.if %11 {
      %c0_10 = arith.constant 0 : index
      %c0_11 = arith.constant 0 : index
      %12 = vector.load %arg5[%c0_10, %c0_11] : memref<2x8xf32, #tpu.memory_space<vmem>>, vector<2x8xf32>
      %c0_12 = arith.constant 0 : index
      %c0_13 = arith.constant 0 : index
      %13 = vector.load %arg4[%c0_12, %c0_13] : memref<1x8xf32, #tpu.memory_space<vmem>>, vector<1x8xf32>
      %14 = vector.broadcast %13 : vector<1x8xf32> to vector<2x8xf32>
      %15 = arith.addf %12, %14 : vector<2x8xf32>
      %c0_14 = arith.constant 0 : index
      %c0_15 = arith.constant 0 : index
      %16 = vector.load %arg5[%c0_14, %c0_15] : memref<2x8xf32, #tpu.memory_space<vmem>>, vector<2x8xf32>
      tpu.vector_store %arg5[%c0_14, %c0_15], %15 {strides = array<i32>} : memref<2x8xf32, #tpu.memory_space<vmem>>, vector<2x8xf32>,
    } else {
    }
    return
  }
  func.func @transform_0(%arg0: i32, %arg1: i32) -> (i32, i32) {
    %c0_i32 = arith.constant 0 : i32
    return %arg0, %arg1 : i32, i32
  }
  func.func @transform_1(%arg0: i32, %arg1: i32) -> (i32, i32) {
    %c0_i32 = arith.constant 0 : i32
    %c0_i32_0 = arith.constant 0 : i32
    return %arg1, %c0_i32 : i32, i32
  }
  func.func @transform_2(%arg0: i32, %arg1: i32) -> (i32, i32) {
    %c0_i32 = arith.constant 0 : i32
    %c0_i32_0 = arith.constant 0 : i32
    %c0_i32_1 = arith.constant 0 : i32
    return %c0_i32, %c0_i32_0 : i32, i32
  }
  func.func @transform_3(%arg0: i32, %arg1: i32) -> (i32, i32) {
    %c0_i32 = arith.constant 0 : i32
    %c0_i32_0 = arith.constant 0 : i32
    return %arg0, %c0_i32 : i32, i32
  }
}

</mosaic_0001>

<llo_original>
// kernel: tpu_custom_call.1
$region0: #{tpu_custom_call.1}
  #allocation0 [shape = 'u32[]', space=smem, size = 0x4, offset = 0x4, fixed_abs, tag = 'smem constant byte address 0x4 - core index']
  #allocation1 [shape = 'u32[144,128]{1,0:T(1,128)}', space=vmem, size = 0x12000, scoped, tag = 'internal scratch']
  %s0 = inlined_call_operand.vmem [shape: bf16[2,1024], index: 0, kind: input, shape index: {}]
  %s1 = inlined_call_operand.vmem [shape: bf16[1024,8], index: 1, kind: input, shape index: {}]
  %s2 = inlined_call_operand.vmem [shape: f32[1,8], index: 2, kind: input, shape index: {}]
  %s3 = inlined_call_operand.hbm [shape: f32[2,8], index: 3, kind: output, shape index: {}]
  %s4 = sld [smem:[#allocation0]]
  $region30: #{tpu_custom_call.1} parent=0
    _
  %s6 = ssub.s32 1, %s4
  %s7 = scalar_select 0, %s6, %s4
  $region1: #{tpu_custom_call.1} parent=0
    #allocation2 [shape = 'u8[1024]{0}', space=vmem, size = 0x400, scoped, tag = 'output window, operand 0, single buffered']
    #allocation3 [shape = 's32[1]{0}', space=sflag, size = 0x4, scoped, tag = 'scoped memory for tpu_custom_call.1']
    %8 = vsyncpa [#allocation3], 0
    // Predicated region
    $region2: #{tpu_custom_call.1} parent=1 // pred_check
      _
    $region3: #{tpu_custom_call.1} parent=1 // pred_check_branch
      %10 = sbr.rel (0) target = $region5
    $region4: #{tpu_custom_call.1} parent=1 // pred_region
      _
    $region5: #{tpu_custom_call.1} parent=1 // pred_fallthru
      _
    // Predicated region
    $region6: #{tpu_custom_call.1} parent=1 // pred_check
      _
    $region7: #{tpu_custom_call.1} parent=1 // pred_check_branch
      %12 = sbr.rel (0) target = $region9
    $region8: #{tpu_custom_call.1} parent=1 // pred_region
      _
    $region9: #{tpu_custom_call.1} parent=1 // pred_fallthru
      _
    // Predicated region
    $region10: #{tpu_custom_call.1} parent=1 // pred_check
      _
    $region11: #{tpu_custom_call.1} parent=1 // pred_check_branch
      %14 = sbr.rel (0) target = $region13
    $region12: #{tpu_custom_call.1} parent=1 // pred_region
      _
    $region13: #{tpu_custom_call.1} parent=1 // pred_fallthru
      _
    %p16 = scmp.eq.s32.totalorder 0, 0
    // Predicated region
    $region14: #{tpu_custom_call.1} parent=1 // pred_check
      %p17 = pneg %p16
    $region15: #{tpu_custom_call.1} parent=1 // pred_check_branch
      %19 = sbr.rel (%p17) target = $region17
    $region16: #{tpu_custom_call.1} parent=1 // pred_region
      %vm20 = vcmask 58368
      %21 = vst.msk [vmem:[#allocation2] sm:$0x3] %vm20, 0.0
    $region17: #{tpu_custom_call.1} parent=1 // pred_fallthru
      _
    %v22 = vld [vmem:[#allocation2] sm:$0x3]
    %v23 = vld [vmem:[%s0] sm:$0xff]
    %v24 = vld [vmem:[%s1] sm:$0xf]
    %v25 = vld [vmem:[%s1 + $0x4] sm:$0xf]
    %v26 = vld [vmem:[%s1 + $0x8] sm:$0xf]
    %v27 = vld [vmem:[%s1 + $0xc] sm:$0xf]
    %v28 = vld [vmem:[%s1 + $0x10] sm:$0xf]
    %v29 = vld [vmem:[%s1 + $0x14] sm:$0xf]
    %v30 = vld [vmem:[%s1 + $0x18] sm:$0xf]
    %v31 = vld [vmem:[%s1 + $0x1c] sm:$0xf]
    %v32 = vld [vmem:[%s1 + $0x20] sm:$0xf]
    %v33 = vld [vmem:[%s1 + $0x24] sm:$0xf]
    %v34 = vld [vmem:[%s1 + $0x28] sm:$0xf]
    %v35 = vld [vmem:[%s1 + $0x2c] sm:$0xf]
    %v36 = vld [vmem:[%s1 + $0x30] sm:$0xf]
    %v37 = vld [vmem:[%s1 + $0x34] sm:$0xf]
    %v38 = vld [vmem:[%s1 + $0x38] sm:$0xf]
    %v39 = vld [vmem:[%s1 + $0x3c] sm:$0xf]
    %v40 = vld [vmem:[%s1 + $0x40] sm:$0xf]
    %v41 = vld [vmem:[%s1 + $0x44] sm:$0xf]
    %v42 = vld [vmem:[%s1 + $0x48] sm:$0xf]
    %v43 = vld [vmem:[%s1 + $0x4c] sm:$0xf]
    %v44 = vld [vmem:[%s1 + $0x50] sm:$0xf]
    %v45 = vld [vmem:[%s1 + $0x54] sm:$0xf]
    %v46 = vld [vmem:[%s1 + $0x58] sm:$0xf]
    %v47 = vld [vmem:[%s1 + $0x5c] sm:$0xf]
    %v48 = vld [vmem:[%s1 + $0x60] sm:$0xf]
    %v49 = vld [vmem:[%s1 + $0x64] sm:$0xf]
    %v50 = vld [vmem:[%s1 + $0x68] sm:$0xf]
    %v51 = vld [vmem:[%s1 + $0x6c] sm:$0xf]
    %v52 = vld [vmem:[%s1 + $0x70] sm:$0xf]
    %v53 = vld [vmem:[%s1 + $0x74] sm:$0xf]
    %v54 = vld [vmem:[%s1 + $0x78] sm:$0xf]
    %v55 = vld [vmem:[%s1 + $0x7c] sm:$0xf]
    %v56 = vld [vmem:[%s1 + $0x80] sm:$0xf]
    %v57 = vld [vmem:[%s1 + $0x84] sm:$0xf]
    %v58 = vld [vmem:[%s1 + $0x88] sm:$0xf]
    %v59 = vld [vmem:[%s1 + $0x8c] sm:$0xf]
    %v60 = vld [vmem:[%s1 + $0x90] sm:$0xf]
    %v61 = vld [vmem:[%s1 + $0x94] sm:$0xf]
    %v62 = vld [vmem:[%s1 + $0x98] sm:$0xf]
    %v63 = vld [vmem:[%s1 + $0x9c] sm:$0xf]
    %v64 = vld [vmem:[%s1 + $0xa0] sm:$0xf]
    %v65 = vld [vmem:[%s1 + $0xa4] sm:$0xf]
    %v66 = vld [vmem:[%s1 + $0xa8] sm:$0xf]
    %v67 = vld [vmem:[%s1 + $0xac] sm:$0xf]
    %v68 = vld [vmem:[%s1 + $0xb0] sm:$0xf]
    %v69 = vld [vmem:[%s1 + $0xb4] sm:$0xf]
    %v70 = vld [vmem:[%s1 + $0xb8] sm:$0xf]
    %v71 = vld [vmem:[%s1 + $0xbc] sm:$0xf]
    %v72 = vld [vmem:[%s1 + $0xc0] sm:$0xf]
    %v73 = vld [vmem:[%s1 + $0xc4] sm:$0xf]
    %v74 = vld [vmem:[%s1 + $0xc8] sm:$0xf]
    %v75 = vld [vmem:[%s1 + $0xcc] sm:$0xf]
    %v76 = vld [vmem:[%s1 + $0xd0] sm:$0xf]
    %v77 = vld [vmem:[%s1 + $0xd4] sm:$0xf]
    %v78 = vld [vmem:[%s1 + $0xd8] sm:$0xf]
    %v79 = vld [vmem:[%s1 + $0xdc] sm:$0xf]
    %v80 = vld [vmem:[%s1 + $0xe0] sm:$0xf]
    %v81 = vld [vmem:[%s1 + $0xe4] sm:$0xf]
    %v82 = vld [vmem:[%s1 + $0xe8] sm:$0xf]
    %v83 = vld [vmem:[%s1 + $0xec] sm:$0xf]
    %v84 = vld [vmem:[%s1 + $0xf0] sm:$0xf]
    %v85 = vld [vmem:[%s1 + $0xf4] sm:$0xf]
    %v86 = vld [vmem:[%s1 + $0xf8] sm:$0xf]
    %v87 = vld [vmem:[%s1 + $0xfc] sm:$0xf]
    %v88 = vld [vmem:[%s1 + $0x100] sm:$0xf]
    %v89 = vld [vmem:[%s1 + $0x104] sm:$0xf]
    %v90 = vld [vmem:[%s1 + $0x108] sm:$0xf]
    %v91 = vld [vmem:[%s1 + $0x10c] sm:$0xf]
    %v92 = vld [vmem:[%s1 + $0x110] sm:$0xf]
    %v93 = vld [vmem:[%s1 + $0x114] sm:$0xf]
    %v94 = vld [vmem:[%s1 + $0x118] sm:$0xf]
    %v95 = vld [vmem:[%s1 + $0x11c] sm:$0xf]
    %v96 = vld [vmem:[%s1 + $0x120] sm:$0xf]
    %v97 = vld [vmem:[%s1 + $0x124] sm:$0xf]
    %v98 = vld [vmem:[%s1 + $0x128] sm:$0xf]
    %v99 = vld [vmem:[%s1 + $0x12c] sm:$0xf]
    %v100 = vld [vmem:[%s1 + $0x130] sm:$0xf]
    %v101 = vld [vmem:[%s1 + $0x134] sm:$0xf]
    %v102 = vld [vmem:[%s1 + $0x138] sm:$0xf]
    %v103 = vld [vmem:[%s1 + $0x13c] sm:$0xf]
    %v104 = vld [vmem:[%s1 + $0x140] sm:$0xf]
    %v105 = vld [vmem:[%s1 + $0x144] sm:$0xf]
    %v106 = vld [vmem:[%s1 + $0x148] sm:$0xf]
    %v107 = vld [vmem:[%s1 + $0x14c] sm:$0xf]
    %v108 = vld [vmem:[%s1 + $0x150] sm:$0xf]
    %v109 = vld [vmem:[%s1 + $0x154] sm:$0xf]
    %v110 = vld [vmem:[%s1 + $0x158] sm:$0xf]
    %v111 = vld [vmem:[%s1 + $0x15c] sm:$0xf]
    %v112 = vld [vmem:[%s1 + $0x160] sm:$0xf]
    %v113 = vld [vmem:[%s1 + $0x164] sm:$0xf]
    %v114 = vld [vmem:[%s1 + $0x168] sm:$0xf]
    %v115 = vld [vmem:[%s1 + $0x16c] sm:$0xf]
    %v116 = vld [vmem:[%s1 + $0x170] sm:$0xf]
    %v117 = vld [vmem:[%s1 + $0x174] sm:$0xf]
    %v118 = vld [vmem:[%s1 + $0x178] sm:$0xf]
    %v119 = vld [vmem:[%s1 + $0x17c] sm:$0xf]
    %v120 = vld [vmem:[%s1 + $0x180] sm:$0xf]
    %v121 = vld [vmem:[%s1 + $0x184] sm:$0xf]
    %v122 = vld [vmem:[%s1 + $0x188] sm:$0xf]
    %v123 = vld [vmem:[%s1 + $0x18c] sm:$0xf]
    %v124 = vld [vmem:[%s1 + $0x190] sm:$0xf]
    %v125 = vld [vmem:[%s1 + $0x194] sm:$0xf]
    %v126 = vld [vmem:[%s1 + $0x198] sm:$0xf]
    %v127 = vld [vmem:[%s1 + $0x19c] sm:$0xf]
    %v128 = vld [vmem:[%s1 + $0x1a0] sm:$0xf]
    %v129 = vld [vmem:[%s1 + $0x1a4] sm:$0xf]
    %v130 = vld [vmem:[%s1 + $0x1a8] sm:$0xf]
    %v131 = vld [vmem:[%s1 + $0x1ac] sm:$0xf]
    %v132 = vld [vmem:[%s1 + $0x1b0] sm:$0xf]
    %v133 = vld [vmem:[%s1 + $0x1b4] sm:$0xf]
    %v134 = vld [vmem:[%s1 + $0x1b8] sm:$0xf]
    %v135 = vld [vmem:[%s1 + $0x1bc] sm:$0xf]
    %v136 = vld [vmem:[%s1 + $0x1c0] sm:$0xf]
    %v137 = vld [vmem:[%s1 + $0x1c4] sm:$0xf]
    %v138 = vld [vmem:[%s1 + $0x1c8] sm:$0xf]
    %v139 = vld [vmem:[%s1 + $0x1cc] sm:$0xf]
    %v140 = vld [vmem:[%s1 + $0x1d0] sm:$0xf]
    %v141 = vld [vmem:[%s1 + $0x1d4] sm:$0xf]
    %v142 = vld [vmem:[%s1 + $0x1d8] sm:$0xf]
    %v143 = vld [vmem:[%s1 + $0x1dc] sm:$0xf]
    %v144 = vld [vmem:[%s1 + $0x1e0] sm:$0xf]
    %v145 = vld [vmem:[%s1 + $0x1e4] sm:$0xf]
    %v146 = vld [vmem:[%s1 + $0x1e8] sm:$0xf]
    %v147 = vld [vmem:[%s1 + $0x1ec] sm:$0xf]
    %v148 = vld [vmem:[%s1 + $0x1f0] sm:$0xf]
    %v149 = vld [vmem:[%s1 + $0x1f4] sm:$0xf]
    %v150 = vld [vmem:[%s1 + $0x1f8] sm:$0xf]
    %v151 = vld [vmem:[%s1 + $0x1fc] sm:$0xf]
    %v153 = vcombine.high %v23, %v23
    %v155 = vunpack.c.l.s4 1966171168
    %v156 = vunpack.c.0.s8 %v155
    %v157 = vlaneseq
    %v158 = vshrl.u32 %v157, 7
    %v159 = vsub.s32 %v156, %v158
    %v160 = vrot.slane %v23, %v159
    %v162 = vunpack.c.l.s4 1966171168
    %v163 = vunpack.c.0.s8 %v162
    %v164 = vlaneseq
    %v165 = vshrl.u32 %v164, 7
    %v166 = vsub.s32 %v163, %v165
    %v167 = vrot.slane %v153, %v166
    %v168 = vcombine.high %v160, %v160
    %v169 = vcombine.high %v167, %v167
    %v171 = vunpack.c.l.s4 1966171168
    %v172 = vunpack.c.0.s8 %v171
    %v173 = vlaneseq
    %v174 = vshrl.u32 %v173, 7
    %v175 = vsub.s32 %v172, %v174
    %v176 = vrot.slane %v160, %v175
    %v178 = vunpack.c.l.s4 1966171168
    %v179 = vunpack.c.0.s8 %v178
    %v180 = vlaneseq
    %v181 = vshrl.u32 %v180, 7
    %v182 = vsub.s32 %v179, %v181
    %v183 = vrot.slane %v167, %v182
    %v185 = vunpack.c.l.s4 1966171168
    %v186 = vunpack.c.0.s8 %v185
    %v187 = vlaneseq
    %v188 = vshrl.u32 %v187, 7
    %v189 = vsub.s32 %v186, %v188
    %v190 = vrot.slane %v168, %v189
    %v192 = vunpack.c.l.s4 1966171168
    %v193 = vunpack.c.0.s8 %v192
    %v194 = vlaneseq
    %v195 = vshrl.u32 %v194, 7
    %v196 = vsub.s32 %v193, %v195
    %v197 = vrot.slane %v169, %v196
    %v198 = vcombine.high %v176, %v176
    %v199 = vcombine.high %v183, %v183
    %v200 = vcombine.high %v190, %v190
    %v201 = vcombine.high %v197, %v197
    %v338 = vunpack.c.l.b16 %v24
    %v339 = vunpack.c.l.b16 %v25
    %v340 = vunpack.c.l.b16 %v26
    %v341 = vunpack.c.l.b16 %v27
    %v342 = vunpack.c.l.b16 %v28
    %v343 = vunpack.c.l.b16 %v29
    %v344 = vunpack.c.l.b16 %v30
    %v345 = vunpack.c.l.b16 %v31
    %v346 = vunpack.c.l.b16 %v32
    %v347 = vunpack.c.l.b16 %v33
    %v348 = vunpack.c.l.b16 %v34
    %v349 = vunpack.c.l.b16 %v35
    %v350 = vunpack.c.l.b16 %v36
    %v351 = vunpack.c.l.b16 %v37
    %v352 = vunpack.c.l.b16 %v38
    %v353 = vunpack.c.l.b16 %v39
    %v354 = vunpack.c.l.b16 %v40
    %v355 = vunpack.c.l.b16 %v41
    %v356 = vunpack.c.l.b16 %v42
    %v357 = vunpack.c.l.b16 %v43
    %v358 = vunpack.c.l.b16 %v44
    %v359 = vunpack.c.l.b16 %v45
    %v360 = vunpack.c.l.b16 %v46
    %v361 = vunpack.c.l.b16 %v47
    %v362 = vunpack.c.l.b16 %v48
    %v363 = vunpack.c.l.b16 %v49
    %v364 = vunpack.c.l.b16 %v50
    %v365 = vunpack.c.l.b16 %v51
    %v366 = vunpack.c.l.b16 %v52
    %v367 = vunpack.c.l.b16 %v53
    %v368 = vunpack.c.l.b16 %v54
    %v369 = vunpack.c.l.b16 %v55
    %v370 = vunpack.c.l.b16 %v56
    %v371 = vunpack.c.l.b16 %v57
    %v372 = vunpack.c.l.b16 %v58
    %v373 = vunpack.c.l.b16 %v59
    %v374 = vunpack.c.l.b16 %v60
    %v375 = vunpack.c.l.b16 %v61
    %v376 = vunpack.c.l.b16 %v62
    %v377 = vunpack.c.l.b16 %v63
    %v378 = vunpack.c.l.b16 %v64
    %v379 = vunpack.c.l.b16 %v65
    %v380 = vunpack.c.l.b16 %v66
    %v381 = vunpack.c.l.b16 %v67
    %v382 = vunpack.c.l.b16 %v68
    %v383 = vunpack.c.l.b16 %v69
    %v384 = vunpack.c.l.b16 %v70
    %v385 = vunpack.c.l.b16 %v71
    %v386 = vunpack.c.l.b16 %v72
    %v387 = vunpack.c.l.b16 %v73
    %v388 = vunpack.c.l.b16 %v74
    %v389 = vunpack.c.l.b16 %v75
    %v390 = vunpack.c.l.b16 %v76
    %v391 = vunpack.c.l.b16 %v77
    %v392 = vunpack.c.l.b16 %v78
    %v393 = vunpack.c.l.b16 %v79
    %v394 = vunpack.c.l.b16 %v80
    %v395 = vunpack.c.l.b16 %v81
    %v396 = vunpack.c.l.b16 %v82
    %v397 = vunpack.c.l.b16 %v83
    %v398 = vunpack.c.l.b16 %v84
    %v399 = vunpack.c.l.b16 %v85
    %v400 = vunpack.c.l.b16 %v86
    %v401 = vunpack.c.l.b16 %v87
    %v402 = vunpack.c.l.b16 %v88
    %v403 = vunpack.c.l.b16 %v89
    %v404 = vunpack.c.l.b16 %v90
    %v405 = vunpack.c.l.b16 %v91
    %v406 = vunpack.c.l.b16 %v92
    %v407 = vunpack.c.l.b16 %v93
    %v408 = vunpack.c.l.b16 %v94
    %v409 = vunpack.c.l.b16 %v95
    %v410 = vunpack.c.l.b16 %v96
    %v411 = vunpack.c.l.b16 %v97
    %v412 = vunpack.c.l.b16 %v98
    %v413 = vunpack.c.l.b16 %v99
    %v414 = vunpack.c.l.b16 %v100
    %v415 = vunpack.c.l.b16 %v101
    %v416 = vunpack.c.l.b16 %v102
    %v417 = vunpack.c.l.b16 %v103
    %v418 = vunpack.c.l.b16 %v104
    %v419 = vunpack.c.l.b16 %v105
    %v420 = vunpack.c.l.b16 %v106
    %v421 = vunpack.c.l.b16 %v107
    %v422 = vunpack.c.l.b16 %v108
    %v423 = vunpack.c.l.b16 %v109
    %v424 = vunpack.c.l.b16 %v110
    %v425 = vunpack.c.l.b16 %v111
    %v426 = vunpack.c.l.b16 %v112
    %v427 = vunpack.c.l.b16 %v113
    %v428 = vunpack.c.l.b16 %v114
    %v429 = vunpack.c.l.b16 %v115
    %v430 = vunpack.c.l.b16 %v116
    %v431 = vunpack.c.l.b16 %v117
    %v432 = vunpack.c.l.b16 %v118
    %v433 = vunpack.c.l.b16 %v119
    %v434 = vunpack.c.l.b16 %v120
    %v435 = vunpack.c.l.b16 %v121
    %v436 = vunpack.c.l.b16 %v122
    %v437 = vunpack.c.l.b16 %v123
    %v438 = vunpack.c.l.b16 %v124
    %v439 = vunpack.c.l.b16 %v125
    %v440 = vunpack.c.l.b16 %v126
    %v441 = vunpack.c.l.b16 %v127
    %v442 = vunpack.c.l.b16 %v128
    %v443 = vunpack.c.l.b16 %v129
    %v444 = vunpack.c.l.b16 %v130
    %v445 = vunpack.c.l.b16 %v131
    %v446 = vunpack.c.l.b16 %v132
    %v447 = vunpack.c.l.b16 %v133
    %v448 = vunpack.c.l.b16 %v134
    %v449 = vunpack.c.l.b16 %v135
    %v450 = vunpack.c.l.b16 %v136
    %v451 = vunpack.c.l.b16 %v137
    %v452 = vunpack.c.l.b16 %v138
    %v453 = vunpack.c.l.b16 %v139
    %v454 = vunpack.c.l.b16 %v140
    %v455 = vunpack.c.l.b16 %v141
    %v456 = vunpack.c.l.b16 %v142
    %v457 = vunpack.c.l.b16 %v143
    %v458 = vunpack.c.l.b16 %v144
    %v459 = vunpack.c.l.b16 %v145
    %v460 = vunpack.c.l.b16 %v146
    %v461 = vunpack.c.l.b16 %v147
    %v462 = vunpack.c.l.b16 %v148
    %v463 = vunpack.c.l.b16 %v149
    %v464 = vunpack.c.l.b16 %v150
    %v465 = vunpack.c.l.b16 %v151
    %v466 = vpack.c.b16 %v339, %v338
    %v467 = vpack.c.b16 %v341, %v340
    %v468 = vpack.c.b16 %v343, %v342
    %v469 = vpack.c.b16 %v345, %v344
    %v470 = vpack.c.b16 %v347, %v346
    %v471 = vpack.c.b16 %v349, %v348
    %v472 = vpack.c.b16 %v351, %v350
    %v473 = vpack.c.b16 %v353, %v352
    %v474 = vpack.c.b16 %v355, %v354
    %v475 = vpack.c.b16 %v357, %v356
    %v476 = vpack.c.b16 %v359, %v358
    %v477 = vpack.c.b16 %v361, %v360
    %v478 = vpack.c.b16 %v363, %v362
    %v479 = vpack.c.b16 %v365, %v364
    %v480 = vpack.c.b16 %v367, %v366
    %v481 = vpack.c.b16 %v369, %v368
    %v482 = vpack.c.b16 %v371, %v370
    %v483 = vpack.c.b16 %v373, %v372
    %v484 = vpack.c.b16 %v375, %v374
    %v485 = vpack.c.b16 %v377, %v376
    %v486 = vpack.c.b16 %v379, %v378
    %v487 = vpack.c.b16 %v381, %v380
    %v488 = vpack.c.b16 %v383, %v382
    %v489 = vpack.c.b16 %v385, %v384
    %v490 = vpack.c.b16 %v387, %v386
    %v491 = vpack.c.b16 %v389, %v388
    %v492 = vpack.c.b16 %v391, %v390
    %v493 = vpack.c.b16 %v393, %v392
    %v494 = vpack.c.b16 %v395, %v394
    %v495 = vpack.c.b16 %v397, %v396
    %v496 = vpack.c.b16 %v399, %v398
    %v497 = vpack.c.b16 %v401, %v400
    %v498 = vpack.c.b16 %v403, %v402
    %v499 = vpack.c.b16 %v405, %v404
    %v500 = vpack.c.b16 %v407, %v406
    %v501 = vpack.c.b16 %v409, %v408
    %v502 = vpack.c.b16 %v411, %v410
    %v503 = vpack.c.b16 %v413, %v412
    %v504 = vpack.c.b16 %v415, %v414
    %v505 = vpack.c.b16 %v417, %v416
    %v506 = vpack.c.b16 %v419, %v418
    %v507 = vpack.c.b16 %v421, %v420
    %v508 = vpack.c.b16 %v423, %v422
    %v509 = vpack.c.b16 %v425, %v424
    %v510 = vpack.c.b16 %v427, %v426
    %v511 = vpack.c.b16 %v429, %v428
    %v512 = vpack.c.b16 %v431, %v430
    %v513 = vpack.c.b16 %v433, %v432
    %v514 = vpack.c.b16 %v435, %v434
    %v515 = vpack.c.b16 %v437, %v436
    %v516 = vpack.c.b16 %v439, %v438
    %v517 = vpack.c.b16 %v441, %v440
    %v518 = vpack.c.b16 %v443, %v442
    %v519 = vpack.c.b16 %v445, %v444
    %v520 = vpack.c.b16 %v447, %v446
    %v521 = vpack.c.b16 %v449, %v448
    %v522 = vpack.c.b16 %v451, %v450
    %v523 = vpack.c.b16 %v453, %v452
    %v524 = vpack.c.b16 %v455, %v454
    %v525 = vpack.c.b16 %v457, %v456
    %v526 = vpack.c.b16 %v459, %v458
    %v527 = vpack.c.b16 %v461, %v460
    %v528 = vpack.c.b16 %v463, %v462
    %v529 = vpack.c.b16 %v465, %v464
    %594 = vmatprep.subr.bf16.mxu0 0
    %595 = vmatpush1.bf16.msra.mxu0 %v466
    %596 = vmatprep.subr.bf16.mxu0 0
    %597 = vmatpush1.bf16.msra.mxu0 %v467
    %598 = vmatprep.subr.bf16.mxu0 0
    %599 = vmatpush1.bf16.msra.mxu0 %v468
    %600 = vmatprep.subr.bf16.mxu0 0
    %601 = vmatpush1.bf16.msra.mxu0 %v469
    %602 = vmatprep.subr.bf16.mxu0 0
    %603 = vmatpush1.bf16.msra.mxu0 %v470
    %604 = vmatprep.subr.bf16.mxu0 0
    %605 = vmatpush1.bf16.msra.mxu0 %v471
    %606 = vmatprep.subr.bf16.mxu0 0
    %607 = vmatpush1.bf16.msra.mxu0 %v472
    %608 = vmatprep.subr.bf16.mxu0 0
    %609 = vmatpush1.bf16.msra.mxu0 %v473
    %610 = vmatprep.subr.bf16.mxu0 0
    %611 = vmatpush1.bf16.msra.mxu0 %v474
    %612 = vmatprep.subr.bf16.mxu0 0
    %613 = vmatpush1.bf16.msra.mxu0 %v475
    %614 = vmatprep.subr.bf16.mxu0 0
    %615 = vmatpush1.bf16.msra.mxu0 %v476
    %616 = vmatprep.subr.bf16.mxu0 0
    %617 = vmatpush1.bf16.msra.mxu0 %v477
    %618 = vmatprep.subr.bf16.mxu0 0
    %619 = vmatpush1.bf16.msra.mxu0 %v478
    %620 = vmatprep.subr.bf16.mxu0 0
    %621 = vmatpush1.bf16.msra.mxu0 %v479
    %622 = vmatprep.subr.bf16.mxu0 0
    %623 = vmatpush1.bf16.msra.mxu0 %v480
    %624 = vmatprep.subr.bf16.mxu0 0
    %625 = vmatpush1.bf16.msra.mxu0 %v481
    %626 = vmatprep.mubr.bf16.mxu0 %v190
    %627 = vmatmul.mubr.bf16.gmra.mrb[0].mxu0 %v176
    %v628 = vpop.f32.mrb[0].mxu0
    %v629 = vadd.f32 0.0, %v628
    %v630 = vpop.f32.mrb[0].mxu0
    %v631 = vpop.f32.mrb[0].mxu0
    %v632 = vpop.f32.mrb[0].mxu0
    %633 = vdwg.mxu0
    %634 = vmatprep.subr.bf16.mxu0 0
    %635 = vmatpush1.bf16.msra.mxu0 %v482
    %636 = vmatprep.subr.bf16.mxu0 0
    %637 = vmatpush1.bf16.msra.mxu0 %v483
    %638 = vmatprep.subr.bf16.mxu0 0
    %639 = vmatpush1.bf16.msra.mxu0 %v484
    %640 = vmatprep.subr.bf16.mxu0 0
    %641 = vmatpush1.bf16.msra.mxu0 %v485
    %642 = vmatprep.subr.bf16.mxu0 0
    %643 = vmatpush1.bf16.msra.mxu0 %v486
    %644 = vmatprep.subr.bf16.mxu0 0
    %645 = vmatpush1.bf16.msra.mxu0 %v487
    %646 = vmatprep.subr.bf16.mxu0 0
    %647 = vmatpush1.bf16.msra.mxu0 %v488
    %648 = vmatprep.subr.bf16.mxu0 0
    %649 = vmatpush1.bf16.msra.mxu0 %v489
    %650 = vmatprep.subr.bf16.mxu0 0
    %651 = vmatpush1.bf16.msra.mxu0 %v490
    %652 = vmatprep.subr.bf16.mxu0 0
    %653 = vmatpush1.bf16.msra.mxu0 %v491
    %654 = vmatprep.subr.bf16.mxu0 0
    %655 = vmatpush1.bf16.msra.mxu0 %v492
    %656 = vmatprep.subr.bf16.mxu0 0
    %657 = vmatpush1.bf16.msra.mxu0 %v493
    %658 = vmatprep.subr.bf16.mxu0 0
    %659 = vmatpush1.bf16.msra.mxu0 %v494
    %660 = vmatprep.subr.bf16.mxu0 0
    %661 = vmatpush1.bf16.msra.mxu0 %v495
    %662 = vmatprep.subr.bf16.mxu0 0
    %663 = vmatpush1.bf16.msra.mxu0 %v496
    %664 = vmatprep.subr.bf16.mxu0 0
    %665 = vmatpush1.bf16.msra.mxu0 %v497
    %666 = vmatprep.mubr.bf16.mxu0 %v200
    %667 = vmatmul.mubr.bf16.gmra.mrb[0].mxu0 %v198
    %v668 = vpop.f32.mrb[0].mxu0
    %v669 = vadd.f32 %v629, %v668
    %v670 = vpop.f32.mrb[0].mxu0
    %v671 = vpop.f32.mrb[0].mxu0
    %v672 = vpop.f32.mrb[0].mxu0
    %673 = vdwg.mxu0
    %674 = vmatprep.subr.bf16.mxu0 0
    %675 = vmatpush1.bf16.msra.mxu0 %v498
    %676 = vmatprep.subr.bf16.mxu0 0
    %677 = vmatpush1.bf16.msra.mxu0 %v499
    %678 = vmatprep.subr.bf16.mxu0 0
    %679 = vmatpush1.bf16.msra.mxu0 %v500
    %680 = vmatprep.subr.bf16.mxu0 0
    %681 = vmatpush1.bf16.msra.mxu0 %v501
    %682 = vmatprep.subr.bf16.mxu0 0
    %683 = vmatpush1.bf16.msra.mxu0 %v502
    %684 = vmatprep.subr.bf16.mxu0 0
    %685 = vmatpush1.bf16.msra.mxu0 %v503
    %686 = vmatprep.subr.bf16.mxu0 0
    %687 = vmatpush1.bf16.msra.mxu0 %v504
    %688 = vmatprep.subr.bf16.mxu0 0
    %689 = vmatpush1.bf16.msra.mxu0 %v505
    %690 = vmatprep.subr.bf16.mxu0 0
    %691 = vmatpush1.bf16.msra.mxu0 %v506
    %692 = vmatprep.subr.bf16.mxu0 0
    %693 = vmatpush1.bf16.msra.mxu0 %v507
    %694 = vmatprep.subr.bf16.mxu0 0
    %695 = vmatpush1.bf16.msra.mxu0 %v508
    %696 = vmatprep.subr.bf16.mxu0 0
    %697 = vmatpush1.bf16.msra.mxu0 %v509
    %698 = vmatprep.subr.bf16.mxu0 0
    %699 = vmatpush1.bf16.msra.mxu0 %v510
    %700 = vmatprep.subr.bf16.mxu0 0
    %701 = vmatpush1.bf16.msra.mxu0 %v511
    %702 = vmatprep.subr.bf16.mxu0 0
    %703 = vmatpush1.bf16.msra.mxu0 %v512
    %704 = vmatprep.subr.bf16.mxu0 0
    %705 = vmatpush1.bf16.msra.mxu0 %v513
    %706 = vmatprep.mubr.bf16.mxu0 %v197
    %707 = vmatmul.mubr.bf16.gmra.mrb[0].mxu0 %v183
    %v708 = vpop.f32.mrb[0].mxu0
    %v709 = vadd.f32 %v669, %v708
    %v710 = vpop.f32.mrb[0].mxu0
    %v711 = vpop.f32.mrb[0].mxu0
    %v712 = vpop.f32.mrb[0].mxu0
    %713 = vdwg.mxu0
    %714 = vmatprep.subr.bf16.mxu0 0
    %715 = vmatpush1.bf16.msra.mxu0 %v514
    %716 = vmatprep.subr.bf16.mxu0 0
    %717 = vmatpush1.bf16.msra.mxu0 %v515
    %718 = vmatprep.subr.bf16.mxu0 0
    %719 = vmatpush1.bf16.msra.mxu0 %v516
    %720 = vmatprep.subr.bf16.mxu0 0
    %721 = vmatpush1.bf16.msra.mxu0 %v517
    %722 = vmatprep.subr.bf16.mxu0 0
    %723 = vmatpush1.bf16.msra.mxu0 %v518
    %724 = vmatprep.subr.bf16.mxu0 0
    %725 = vmatpush1.bf16.msra.mxu0 %v519
    %726 = vmatprep.subr.bf16.mxu0 0
    %727 = vmatpush1.bf16.msra.mxu0 %v520
    %728 = vmatprep.subr.bf16.mxu0 0
    %729 = vmatpush1.bf16.msra.mxu0 %v521
    %730 = vmatprep.subr.bf16.mxu0 0
    %731 = vmatpush1.bf16.msra.mxu0 %v522
    %732 = vmatprep.subr.bf16.mxu0 0
    %733 = vmatpush1.bf16.msra.mxu0 %v523
    %734 = vmatprep.subr.bf16.mxu0 0
    %735 = vmatpush1.bf16.msra.mxu0 %v524
    %736 = vmatprep.subr.bf16.mxu0 0
    %737 = vmatpush1.bf16.msra.mxu0 %v525
    %738 = vmatprep.subr.bf16.mxu0 0
    %739 = vmatpush1.bf16.msra.mxu0 %v526
    %740 = vmatprep.subr.bf16.mxu0 0
    %741 = vmatpush1.bf16.msra.mxu0 %v527
    %742 = vmatprep.subr.bf16.mxu0 0
    %743 = vmatpush1.bf16.msra.mxu0 %v528
    %744 = vmatprep.subr.bf16.mxu0 0
    %745 = vmatpush1.bf16.msra.mxu0 %v529
    %746 = vmatprep.mubr.bf16.mxu0 %v201
    %747 = vmatmul.mubr.bf16.gmra.mrb[0].mxu0 %v199
    %v748 = vpop.f32.mrb[0].mxu0
    %v749 = vadd.f32 %v709, %v748
    %v750 = vpop.f32.mrb[0].mxu0
    %v751 = vpop.f32.mrb[0].mxu0
    %v752 = vpop.f32.mrb[0].mxu0
    %753 = vdwg.mxu0
    %v754 = vadd.f32 %v22, %v749
    %vm755 = vcmask 58368
    %756 = vst.msk [vmem:[#allocation2] sm:$0x3] %vm755, %v754
    // Predicated region
    $region18: #{tpu_custom_call.1} parent=1 // pred_check
      %p757 = pneg %p16
    $region19: #{tpu_custom_call.1} parent=1 // pred_check_branch
      %759 = sbr.rel (%p757) target = $region21
    $region20: #{tpu_custom_call.1} parent=1 // pred_region
      %v760 = vld [vmem:[#allocation2] sm:$0x3]
      %v761 = vld [vmem:[%s2] sm:$0x1]
      %v763 = vlaneseq
      %v764 = vshrl.u32 %v763, 7
      %v765 = vsub.s32 0, %v764
      %v766 = vrot.slane %v761, %v765
      %v768 = vadd.f32 %v760, %v766
      %769 = vst.msk [vmem:[#allocation2] sm:$0x3] %vm755, %v768
    $region21: #{tpu_custom_call.1} parent=1 // pred_fallthru
      _
    // Predicated region
    $region22: #{tpu_custom_call.1} parent=1 // pred_check
      _
    $region23: #{tpu_custom_call.1} parent=1 // pred_check_branch
      %771 = sbr.rel (0) target = $region25
    $region24: #{tpu_custom_call.1} parent=1 // pred_region
      %s773 = ssub.s32 32, 32
      %774 = vsyncadd [#allocation3], %s773
      %s776 = sshll.u32 [#allocation2], 4
      %s777 = int_to_ptr.vmem [resolvable:$true] %s776
      %779 = dma.vmem_to_hbm [thread:$0]  %s777, 32, %s3, [#allocation3]
    $region25: #{tpu_custom_call.1} parent=1 // pred_fallthru
      _
    // Predicated region
    $region26: #{tpu_custom_call.1} parent=1 // pred_check
      _
    $region27: #{tpu_custom_call.1} parent=1 // pred_check_branch
      %781 = sbr.rel (0) target = $region29
    $region28: #{tpu_custom_call.1} parent=1 // pred_region
      %782 = dma.done [#allocation3], 32
    $region29: #{tpu_custom_call.1} parent=1 // pred_fallthru
      _
    %783 = vsyncpa [#allocation3], 1

</llo_original>
